<compile_context>
chip_gen: v6e
topology: v6e:2x2x1
jax: 0.10.0
libtpu: 0.0.40
codegen_flags: <defaults>
</compile_context>

<pallas_src>
import functools

import numpy as np
import jax
import jax.numpy as jnp
from jax.experimental import pallas as pl
from jax.experimental.pallas import tpu as pltpu

_MXU_COMPUTE_DTYPE = jnp.float32  # keep f32 to preserve the module's numerics


def _round_up(x: int, m: int) -> int:
    return (x + m - 1) // m * m


def _cdiv(a: int, b: int) -> int:
    return -(-a // b)


def _vmem_limit_bytes() -> int:
    """Generation-aware VMEM limit: ~3/4 of physical, capped at 96 MiB."""
    try:
        cap = int(pltpu.get_tpu_info().vmem_capacity_bytes)
    except Exception:
        cap = 64 * 1024 * 1024          # conservative (v7x-sized) fallback
    return int(min(cap * 3 // 4, 96 * 1024 * 1024))


def _pick_tile_rows(N, H, K, Wpc_pad, WCout_pad, vmem_limit):
    """Output rows per grid step, sized on the padded (tiled) VMEM footprint."""
    budget = max(vmem_limit // 2, 2 * 1024 * 1024)
    # resident banded weight (x2 buffers) + bias + slab halo rows (fixed), plus
    # per output row: 1 slab row + 2x double-buffered output row + f32 acc row.
    fixed = 4 * (2 * K * Wpc_pad * WCout_pad + 2 * WCout_pad + (K - 1) * Wpc_pad)
    per_row = 4 * (Wpc_pad + 3 * WCout_pad)
    th = (budget - fixed) // per_row
    th = int(max(1, min(H, th)))
    if th < H:
        th = max(8, th // 8 * 8)        # keep the output block (8,128)-aligned
    if N == 1 and th >= H and H > 8:
        # v7x has 2 TensorCores; make sure both get a grid program.
        th = max(8, _round_up((H + 1) // 2, 8))
    return th


def _elastic_conv_kernel(x_hbm_ref, wb_ref, b_ref, o_ref, slab_ref, copy_sem,
                         *, TH, K):
    """One (batch, row-tile) grid step.

    x_hbm_ref: (N, H_t + K - 1, Wpc_pad)   padded fused-row input, left in HBM
    wb_ref:    (K, Wpc_pad, WCout_pad)     banded weight, resident in VMEM
    b_ref:     (1, WCout_pad)              bias tile (bias replicated over W)
    o_ref:     (TH, WCout_pad)             lane-dense output rows
    slab_ref:  (TH + K - 1, Wpc_pad)       VMEM scratch for this tile's slab
    """
    n = pl.program_id(0)
    t = pl.program_id(1)
    row0 = t * TH

    # DMA this tile's halo'd row slab HBM -> VMEM (no slab duplication in HBM).
    cp = pltpu.make_async_copy(
        x_hbm_ref.at[n, pl.ds(row0, TH + K - 1), :], slab_ref, copy_sem)
    cp.start()
    cp.wait()

    # K MXU matmuls against the banded weight; each LHS is a sublane-shifted
    # slice of the slab (no relayout), contraction = Wpc_pad (128-aligned).
    acc = jnp.dot(slab_ref[pl.ds(0, TH), :], wb_ref[0],
                  preferred_element_type=jnp.float32)
    for kh in range(1, K):
        acc = acc + jnp.dot(slab_ref[pl.ds(kh, TH), :], wb_ref[kh],
                            preferred_element_type=jnp.float32)
    o_ref[...] = (acc + b_ref[...]).astype(o_ref.dtype)


@functools.partial(
    jax.jit, static_argnames=("out_channels", "kernel_size", "max_kernel_size"))
def _elastic_conv_forward(x, weight, bias, *, out_channels, kernel_size,
                          max_kernel_size):
    N, Cin, H, W = x.shape
    K = int(kernel_size)
    Cout = int(out_channels)
    assert K % 2 == 1, "ElasticConv2d Pallas kernel assumes odd kernel sizes"

    # Elastic weight slicing (center crop for smaller kernels), as in PyTorch.
    if K == max_kernel_size:
        w = weight[:Cout, :Cin, :, :]
    else:
        diff = max_kernel_size - K
        start = diff // 2
        w = weight[:Cout, :Cin, start:start + K, start:start + K]
    b = bias[:Cout]

    pad = K // 2
    Wp = W + K - 1
    Wpc = Wp * Cin
    WCout = W * Cout
    Wpc_pad = _round_up(Wpc, 128)        # 128-aligned MXU contraction
    WCout_pad = _round_up(WCout, 128)    # lane-dense output

    vmem_limit = _vmem_limit_bytes()
    TH = _pick_tile_rows(N, H, K, Wpc_pad, WCout_pad, vmem_limit)
    nT = _cdiv(H, TH)
    H_t = nT * TH

    cdt = _MXU_COMPUTE_DTYPE

    # --- wrapper glue (XLA, no duplication): NCHW -> padded fused-row layout.
    x_nhwc = jnp.transpose(x, (0, 2, 3, 1))                      # (N,H,W,Cin)
    x_pad = jnp.pad(x_nhwc, ((0, 0), (pad, pad + (H_t - H)), (pad, pad), (0, 0)))
    x_fused = x_pad.reshape(N, H_t + K - 1, Wpc)
    if Wpc_pad > Wpc:
        x_fused = jnp.pad(x_fused, ((0, 0), (0, 0), (0, Wpc_pad - Wpc)))
    x_fused = x_fused.astype(cdt)

    # Banded (Toeplitz) weight: Wb[kh, wp*Cin+c, w*Cout+o] = w[o,c,kh,wp-w].
    w_t = jnp.transpose(w, (2, 3, 1, 0))                         # (K,K,Cin,Cout)
    wp_idx = np.arange(Wp)[:, None]
    wo_idx = np.arange(W)[None, :]
    kw_rel = wp_idx - wo_idx                                     # (Wp, W)
    valid = (kw_rel >= 0) & (kw_rel < K)
    kw_safe = np.where(valid, kw_rel, 0)
    wb = w_t[:, kw_safe, :, :]                                   # (K,Wp,W,Cin,Cout)
    wb = wb * jnp.asarray(valid.astype(np.float32))[None, :, :, None, None]
    wb = jnp.transpose(wb, (0, 1, 3, 2, 4)).reshape(K, Wpc, WCout)
    wb = jnp.pad(wb, ((0, 0), (0, Wpc_pad - Wpc), (0, WCout_pad - WCout)))
    wb = wb.astype(cdt)

    # Bias replicated over W so it adds directly onto the (w, o) lane layout.
    b_tile = jnp.tile(b, W)
    b_tile = jnp.pad(b_tile, (0, WCout_pad - WCout)).reshape(1, WCout_pad)
    b_tile = b_tile.astype(jnp.float32)

    kernel = functools.partial(_elastic_conv_kernel, TH=TH, K=K)

    flops = 2 * N * nT * K * TH * Wpc_pad * WCout_pad
    bytes_accessed = 4 * (x_fused.size + wb.size + b_tile.size
                          + N * H_t * WCout_pad)

    out = pl.pallas_call(
        kernel,
        out_shape=jax.ShapeDtypeStruct((N, H_t, WCout_pad), jnp.float32),
        grid=(N, nT),
        in_specs=[
            pl.BlockSpec(memory_space=pl.ANY),                       # fused input, HBM
            pl.BlockSpec((K, Wpc_pad, WCout_pad), lambda n, t: (0, 0, 0)),
            pl.BlockSpec((1, WCout_pad), lambda n, t: (0, 0)),
        ],
        out_specs=pl.BlockSpec((None, TH, WCout_pad), lambda n, t: (n, t, 0)),
        scratch_shapes=[
            pltpu.VMEM((TH + K - 1, Wpc_pad), cdt),
            pltpu.SemaphoreType.DMA,
        ],
        compiler_params=pltpu.CompilerParams(
            dimension_semantics=("parallel", "parallel"),
            vmem_limit_bytes=int(vmem_limit)),
        cost_estimate=pl.CostEstimate(
            flops=flops, transcendentals=0, bytes_accessed=bytes_accessed),
    )(x_fused, wb, b_tile)

    # (N, H_t, WCout_pad) -> (N, H, W, Cout) -> NCHW
    out = out[:, :H, :WCout].reshape(N, H, W, Cout)
    return jnp.transpose(out, (0, 3, 1, 2)).astype(x.dtype)


class ElasticConv2d:
    """Elastic conv: weight (max_out, max_in, Kmax, Kmax), bias (max_out,)."""

    def __init__(self, max_in_channels, max_out_channels, kernel_sizes, key):
        self.max_in_channels = max_in_channels
        self.max_out_channels = max_out_channels
        self.kernel_sizes = sorted(kernel_sizes)
        self.max_kernel_size = max(kernel_sizes)

        # reset_parameters(): kaiming_uniform_(a=sqrt(5)) -> U(-1/sqrt(fan_in), 1/sqrt(fan_in))
        k_w, k_b = jax.random.split(key)
        fan_in = max_in_channels * self.max_kernel_size * self.max_kernel_size
        bound = 1.0 / np.sqrt(fan_in)
        self.weight = jax.random.uniform(
            k_w,
            (max_out_channels, max_in_channels,
             self.max_kernel_size, self.max_kernel_size),
            jnp.float32, minval=-bound, maxval=bound)
        self.bias = jax.random.uniform(
            k_b, (max_out_channels,), jnp.float32, minval=-bound, maxval=bound)

    def __call__(self, x, out_channels=None, kernel_size=None):
        # `is None` checks so out_channels=0 / kernel_size=0 are not silently
        # swapped for the max (unlike the PyTorch `or` idiom).
        out_channels = (self.max_out_channels if out_channels is None
                        else out_channels)
        kernel_size = (self.max_kernel_size if kernel_size is None
                       else kernel_size)
        return _elastic_conv_forward(
            x, self.weight, self.bias,
            out_channels=int(out_channels), kernel_size=int(kernel_size),
            max_kernel_size=int(self.max_kernel_size))


if __name__ == "__main__":
    key = jax.random.PRNGKey(0)
    k_param, k_x = jax.random.split(key)

    max_in, max_out = 4, 8
    layer = ElasticConv2d(max_in, max_out, kernel_sizes=[3, 5, 7], key=k_param)

    # Small input: N=2, C=4, H=W=16 (NCHW, like the PyTorch module).
    x = jax.random.normal(k_x, (2, 4, 16, 16), jnp.float32)

    def reference(x, out_channels, kernel_size):
        diff = layer.max_kernel_size - kernel_size
        s = diff // 2
        w_ref = layer.weight[:out_channels, :x.shape[1],
                             s:s + kernel_size, s:s + kernel_size]
        b_ref = layer.bias[:out_channels]
        pad = kernel_size // 2
        return jax.lax.conv_general_dilated(
            x, w_ref, window_strides=(1, 1),
            padding=[(pad, pad), (pad, pad)],
            dimension_numbers=("NCHW", "OIHW", "NCHW")
        ) + b_ref[None, :, None, None]

    # Exercise elasticity: cropped 5x5 / 6 channels, 3x3 / full width, full 7x7.
    for (oc, ks) in [(6, 5), (8, 3), (8, 7)]:
        y = jax.block_until_ready(layer(x, out_channels=oc, kernel_size=ks))
        y_ref = reference(x, oc, ks)
        assert y.shape == (2, oc, 16, 16), (y.shape, oc, ks)
        err = float(jnp.max(jnp.abs(y - y_ref)))
        assert err < 1e-4, (oc, ks, err)

    print("KERNEL_OK")
</pallas_src>

<mosaic_0001>
module attributes {stable_mosaic.version = 11 : i64} {
  func.func @_elastic_conv_kernel(%arg0: i32, %arg1: i32, %arg2: memref<2x20x128xf32, #tpu.memory_space<any>>, %arg3: memref<5x128x128xf32, #tpu.memory_space<vmem>>, %arg4: memref<1x128xf32, #tpu.memory_space<vmem>>, %arg5: memref<1x16x128xf32, #tpu.memory_space<vmem>>, %arg6: memref<20x128xf32, #tpu.memory_space<vmem>>, %arg7: memref<!tpu.dma_semaphore, #tpu.memory_space<semaphore_mem>>) attributes {dimension_semantics = [#tpu.dimension_semantics<parallel>, #tpu.dimension_semantics<parallel>], iteration_bounds = array<i64: 2, 1>, scalar_prefetch = 0 : i64, scratch_operands = 2 : i64, tpu.core_type = #tpu.core_type<tc>, window_params = [{}, {pipeline_mode = #tpu.pipeline_mode<synchronous>, transform_indices = @transform_1, window_bounds = array<i64: 5, 128, 128>}, {pipeline_mode = #tpu.pipeline_mode<synchronous>, transform_indices = @transform_2, window_bounds = array<i64: 1, 128>}, {transform_indices = @transform_3, window_bounds = array<i64: 1, 16, 128>}]} {
    %c16_i32 = arith.constant 16 : i32
    %0 = arith.muli %arg1, %c16_i32 : i32
    %c0_i32 = arith.constant 0 : i32
    %1 = tpu.memref_slice %arg2[%arg0, %0, %c0_i32] : memref<2x20x128xf32, #tpu.memory_space<any>> -> memref<1x20x128xf32, #tpu.memory_space<any>>
    %2 = tpu.memref_squeeze %1 : memref<1x20x128xf32, #tpu.memory_space<any>> -> memref<20x128xf32, #tpu.memory_space<any>>
    tpu.enqueue_dma source(%2 : memref<20x128xf32, #tpu.memory_space<any>>) target(%arg6 : memref<20x128xf32, #tpu.memory_space<vmem>>) target_semaphore(%arg7 : memref<!tpu.dma_semaphore, #tpu.memory_space<semaphore_mem>>)
    %c0_i32_0 = arith.constant 0 : i32
    %3 = tpu.memref_slice %arg2[%arg0, %0, %c0_i32_0] : memref<2x20x128xf32, #tpu.memory_space<any>> -> memref<1x20x128xf32, #tpu.memory_space<any>>
    %4 = tpu.memref_squeeze %3 : memref<1x20x128xf32, #tpu.memory_space<any>> -> memref<20x128xf32, #tpu.memory_space<any>>
    tpu.wait_dma2 semaphore(%arg7 : memref<!tpu.dma_semaphore, #tpu.memory_space<semaphore_mem>>) src(%4 : memref<20x128xf32, #tpu.memory_space<any>>) dst(%arg6 : memref<20x128xf32, #tpu.memory_space<vmem>>)
    %c0 = arith.constant 0 : index
    %c0_1 = arith.constant 0 : index
    %5 = vector.load %arg6[%c0, %c0_1] : memref<20x128xf32, #tpu.memory_space<vmem>>, vector<16x128xf32>
    %c0_2 = arith.constant 0 : index
    %c0_3 = arith.constant 0 : index
    %c0_4 = arith.constant 0 : index
    %6 = vector.load %arg3[%c0_2, %c0_3, %c0_4] : memref<5x128x128xf32, #tpu.memory_space<vmem>>, vector<1x128x128xf32>
    %7 = vector.shape_cast %6 : vector<1x128x128xf32> to vector<128x128xf32>
    %cst = arith.constant dense<0.000000e+00> : vector<16x128xf32>
    %8 = tpu.matmul %5, %7, %cst {dimension_numbers = #tpu.dot_dimension_numbers<[1], [0], [0], [1], [0, 0, 1, 1], [], []>} : vector<16x128xf32>, vector<128x128xf32>, vector<16x128xf32> -> vector<16x128xf32>
    %c1 = arith.constant 1 : index
    %c0_5 = arith.constant 0 : index
    %9 = vector.load %arg6[%c1, %c0_5] : memref<20x128xf32, #tpu.memory_space<vmem>>, vector<16x128xf32>
    %c1_6 = arith.constant 1 : index
    %c0_7 = arith.constant 0 : index
    %c0_8 = arith.constant 0 : index
    %10 = vector.load %arg3[%c1_6, %c0_7, %c0_8] : memref<5x128x128xf32, #tpu.memory_space<vmem>>, vector<1x128x128xf32>
    %11 = vector.shape_cast %10 : vector<1x128x128xf32> to vector<128x128xf32>
    %cst_9 = arith.constant dense<0.000000e+00> : vector<16x128xf32>
    %12 = tpu.matmul %9, %11, %cst_9 {dimension_numbers = #tpu.dot_dimension_numbers<[1], [0], [0], [1], [0, 0, 1, 1], [], []>} : vector<16x128xf32>, vector<128x128xf32>, vector<16x128xf32> -> vector<16x128xf32>
    %13 = arith.addf %8, %12 : vector<16x128xf32>
    %c2 = arith.constant 2 : index
    %c0_10 = arith.constant 0 : index
    %14 = vector.load %arg6[%c2, %c0_10] : memref<20x128xf32, #tpu.memory_space<vmem>>, vector<16x128xf32>
    %c2_11 = arith.constant 2 : index
    %c0_12 = arith.constant 0 : index
    %c0_13 = arith.constant 0 : index
    %15 = vector.load %arg3[%c2_11, %c0_12, %c0_13] : memref<5x128x128xf32, #tpu.memory_space<vmem>>, vector<1x128x128xf32>
    %16 = vector.shape_cast %15 : vector<1x128x128xf32> to vector<128x128xf32>
    %cst_14 = arith.constant dense<0.000000e+00> : vector<16x128xf32>
    %17 = tpu.matmul %14, %16, %cst_14 {dimension_numbers = #tpu.dot_dimension_numbers<[1], [0], [0], [1], [0, 0, 1, 1], [], []>} : vector<16x128xf32>, vector<128x128xf32>, vector<16x128xf32> -> vector<16x128xf32>
    %18 = arith.addf %13, %17 : vector<16x128xf32>
    %c3 = arith.constant 3 : index
    %c0_15 = arith.constant 0 : index
    %19 = vector.load %arg6[%c3, %c0_15] : memref<20x128xf32, #tpu.memory_space<vmem>>, vector<16x128xf32>
    %c3_16 = arith.constant 3 : index
    %c0_17 = arith.constant 0 : index
    %c0_18 = arith.constant 0 : index
    %20 = vector.load %arg3[%c3_16, %c0_17, %c0_18] : memref<5x128x128xf32, #tpu.memory_space<vmem>>, vector<1x128x128xf32>
    %21 = vector.shape_cast %20 : vector<1x128x128xf32> to vector<128x128xf32>
    %cst_19 = arith.constant dense<0.000000e+00> : vector<16x128xf32>
    %22 = tpu.matmul %19, %21, %cst_19 {dimension_numbers = #tpu.dot_dimension_numbers<[1], [0], [0], [1], [0, 0, 1, 1], [], []>} : vector<16x128xf32>, vector<128x128xf32>, vector<16x128xf32> -> vector<16x128xf32>
    %23 = arith.addf %18, %22 : vector<16x128xf32>
    %c4 = arith.constant 4 : index
    %c0_20 = arith.constant 0 : index
    %24 = vector.load %arg6[%c4, %c0_20] : memref<20x128xf32, #tpu.memory_space<vmem>>, vector<16x128xf32>
    %c4_21 = arith.constant 4 : index
    %c0_22 = arith.constant 0 : index
    %c0_23 = arith.constant 0 : index
    %25 = vector.load %arg3[%c4_21, %c0_22, %c0_23] : memref<5x128x128xf32, #tpu.memory_space<vmem>>, vector<1x128x128xf32>
    %26 = vector.shape_cast %25 : vector<1x128x128xf32> to vector<128x128xf32>
    %cst_24 = arith.constant dense<0.000000e+00> : vector<16x128xf32>
    %27 = tpu.matmul %24, %26, %cst_24 {dimension_numbers = #tpu.dot_dimension_numbers<[1], [0], [0], [1], [0, 0, 1, 1], [], []>} : vector<16x128xf32>, vector<128x128xf32>, vector<16x128xf32> -> vector<16x128xf32>
    %28 = arith.addf %23, %27 : vector<16x128xf32>
    %c0_25 = arith.constant 0 : index
    %c0_26 = arith.constant 0 : index
    %29 = vector.load %arg4[%c0_25, %c0_26] : memref<1x128xf32, #tpu.memory_space<vmem>>, vector<1x128xf32>
    %30 = vector.broadcast %29 : vector<1x128xf32> to vector<16x128xf32>
    %31 = arith.addf %28, %30 : vector<16x128xf32>
    %c0_27 = arith.constant 0 : index
    %c0_28 = arith.constant 0 : index
    %c0_29 = arith.constant 0 : index
    %32 = vector.load %arg5[%c0_27, %c0_28, %c0_29] : memref<1x16x128xf32, #tpu.memory_space<vmem>>, vector<1x16x128xf32>
    %33 = vector.shape_cast %32 : vector<1x16x128xf32> to vector<16x128xf32>
    %34 = vector.shape_cast %31 : vector<16x128xf32> to vector<1x16x128xf32>
    tpu.vector_store %arg5[%c0_27, %c0_28, %c0_29], %34 {strides = array<i32>} : memref<1x16x128xf32, #tpu.memory_space<vmem>>, vector<1x16x128xf32>,
    return
  }
  func.func @transform_1(%arg0: i32, %arg1: i32) -> (i32, i32, i32) {
    %c0_i32 = arith.constant 0 : i32
    %c0_i32_0 = arith.constant 0 : i32
    %c0_i32_1 = arith.constant 0 : i32
    %c0_i32_2 = arith.constant 0 : i32
    return %c0_i32, %c0_i32_0, %c0_i32_1 : i32, i32, i32
  }
  func.func @transform_2(%arg0: i32, %arg1: i32) -> (i32, i32) {
    %c0_i32 = arith.constant 0 : i32
    %c0_i32_0 = arith.constant 0 : i32
    %c0_i32_1 = arith.constant 0 : i32
    return %c0_i32, %c0_i32_0 : i32, i32
  }
  func.func @transform_3(%arg0: i32, %arg1: i32) -> (i32, i32, i32) {
    %c0_i32 = arith.constant 0 : i32
    %c0_i32_0 = arith.constant 0 : i32
    return %arg0, %arg1, %c0_i32 : i32, i32, i32
  }
}

</mosaic_0001>

<llo_original>
// kernel: tile.8
$region0: #{tile.8}
  #allocation0 [shape = 's32[1]{0}', space=sflag, size = 0x4, scoped, tag = 'scoped memory for tile.8']
  %s0 = inlined_call_operand.vmem [shape: f32[6], index: 0, kind: input, shape index: {}]
  %s1 = inlined_call_operand.vmem [shape: f32[16,6], index: 1, kind: output, shape index: {}]
  // Predicated region
  $region2: #{tile.8} parent=0 // pred_check
    _
  $region3: #{tile.8} parent=0 // pred_check_branch
    %3 = sbr.rel (0) target = $region5
  $region4: #{tile.8} parent=0 // pred_region
    _
  $region5: #{tile.8} parent=0 // pred_fallthru
    _
  %v4 = vld [vmem:[%s0] ss:$0 sm:$0xff]
  %5 = vst [vmem:[%s1] sm:$0xff] %v4
  %s6 = scalar_lea.vmem %s1, 8
  %7 = vst [vmem:[%s6] sm:$0xff] %v4

// kernel: tile.9
$region0: #{tile.9}
  %s0 = inlined_call_operand.vmem [shape: f32[16,6], index: 0, kind: input, shape index: {}]
  %s1 = inlined_call_operand.vmem [shape: f32[96], index: 1, kind: output, shape index: {}]
  $region1: #{tile.9} parent=0
    #allocation0 [shape = 'u8[4096]{0}', space=vmem, size = 0x1000, scoped, tag = 'scoped mem for output reshape']
    %v2 = vld [vmem:[%s0] sm:$0x1]
    %vm3 = vcmask 48128
    %4 = vst.msk [vmem:[#allocation0] sm:$0x1] %vm3, %v2
    %s5 = scalar_lea.vmem %s0, 15
    %v6 = vld [vmem:[%s5] sm:$0x1]
    %7 = vrot.lane.b32.xlu0 %v6, 90
    %v8 = vpop.permute.xlu0 %7
    %vm9 = vcmask 786128
    %10 = vst.msk [vmem:[#allocation0] sm:$0x1] %vm9, %v8
    %s11 = scalar_lea.vmem %s0, 14
    %v12 = vld [vmem:[%s11] sm:$0x1]
    %13 = vrot.lane.b32.xlu0 %v12, 84
    %v14 = vpop.permute.xlu0 %13
    %vm15 = vcmask 736928
    %16 = vst.msk [vmem:[#allocation0] sm:$0x1] %vm15, %v14
    %s17 = scalar_lea.vmem %s0, 13
    %v18 = vld [vmem:[%s17] sm:$0x1]
    %19 = vrot.lane.b32.xlu0 %v18, 78
    %v20 = vpop.permute.xlu0 %19
    %vm21 = vcmask 687728
    %22 = vst.msk [vmem:[#allocation0] sm:$0x1] %vm21, %v20
    %s23 = scalar_lea.vmem %s0, 12
    %v24 = vld [vmem:[%s23] sm:$0x1]
    %25 = vrot.lane.b32.xlu0 %v24, 72
    %v26 = vpop.permute.xlu0 %25
    %vm27 = vcmask 638528
    %28 = vst.msk [vmem:[#allocation0] sm:$0x1] %vm27, %v26
    %s29 = scalar_lea.vmem %s0, 11
    %v30 = vld [vmem:[%s29] sm:$0x1]
    %31 = vrot.lane.b32.xlu0 %v30, 66
    %v32 = vpop.permute.xlu0 %31
    %vm33 = vcmask 589328
    %34 = vst.msk [vmem:[#allocation0] sm:$0x1] %vm33, %v32
    %s35 = scalar_lea.vmem %s0, 10
    %v36 = vld [vmem:[%s35] sm:$0x1]
    %37 = vrot.lane.b32.xlu0 %v36, 60
    %v38 = vpop.permute.xlu0 %37
    %vm39 = vcmask 540128
    %40 = vst.msk [vmem:[#allocation0] sm:$0x1] %vm39, %v38
    %s41 = scalar_lea.vmem %s0, 9
    %v42 = vld [vmem:[%s41] sm:$0x1]
    %43 = vrot.lane.b32.xlu0 %v42, 54
    %v44 = vpop.permute.xlu0 %43
    %vm45 = vcmask 490928
    %46 = vst.msk [vmem:[#allocation0] sm:$0x1] %vm45, %v44
    %s47 = scalar_lea.vmem %s0, 8
    %v48 = vld [vmem:[%s47] sm:$0x1]
    %49 = vrot.lane.b32.xlu0 %v48, 48
    %v50 = vpop.permute.xlu0 %49
    %vm51 = vcmask 441728
    %52 = vst.msk [vmem:[#allocation0] sm:$0x1] %vm51, %v50
    %s53 = scalar_lea.vmem %s0, 7
    %v54 = vld [vmem:[%s53] sm:$0x1]
    %55 = vrot.lane.b32.xlu0 %v54, 42
    %v56 = vpop.permute.xlu0 %55
    %vm57 = vcmask 392528
    %58 = vst.msk [vmem:[#allocation0] sm:$0x1] %vm57, %v56
    %s59 = scalar_lea.vmem %s0, 6
    %v60 = vld [vmem:[%s59] sm:$0x1]
    %61 = vrot.lane.b32.xlu0 %v60, 36
    %v62 = vpop.permute.xlu0 %61
    %vm63 = vcmask 343328
    %64 = vst.msk [vmem:[#allocation0] sm:$0x1] %vm63, %v62
    %s65 = scalar_lea.vmem %s0, 5
    %v66 = vld [vmem:[%s65] sm:$0x1]
    %67 = vrot.lane.b32.xlu0 %v66, 30
    %v68 = vpop.permute.xlu0 %67
    %vm69 = vcmask 294128
    %70 = vst.msk [vmem:[#allocation0] sm:$0x1] %vm69, %v68
    %s71 = scalar_lea.vmem %s0, 4
    %v72 = vld [vmem:[%s71] sm:$0x1]
    %73 = vrot.lane.b32.xlu0 %v72, 24
    %v74 = vpop.permute.xlu0 %73
    %vm75 = vcmask 244928
    %76 = vst.msk [vmem:[#allocation0] sm:$0x1] %vm75, %v74
    %s77 = scalar_lea.vmem %s0, 3
    %v78 = vld [vmem:[%s77] sm:$0x1]
    %79 = vrot.lane.b32.xlu0 %v78, 18
    %v80 = vpop.permute.xlu0 %79
    %vm81 = vcmask 195728
    %82 = vst.msk [vmem:[#allocation0] sm:$0x1] %vm81, %v80
    %s83 = scalar_lea.vmem %s0, 2
    %v84 = vld [vmem:[%s83] sm:$0x1]
    %85 = vrot.lane.b32.xlu0 %v84, 12
    %v86 = vpop.permute.xlu0 %85
    %vm87 = vcmask 146528
    %88 = vst.msk [vmem:[#allocation0] sm:$0x1] %vm87, %v86
    %s89 = scalar_lea.vmem %s0, 1
    %v90 = vld [vmem:[%s89] sm:$0x1]
    %91 = vrot.lane.b32.xlu0 %v90, 6
    %v92 = vpop.permute.xlu0 %91
    %vm93 = vcmask 97328
    %94 = vst.msk [vmem:[#allocation0] sm:$0x1] %vm93, %v92
    %s96 = sshll.u32 1, 1
    %s97 = ssub.s32 %s96, 1
    %v99 = vld [vmem:[#allocation0] sm:%s97]
    %s100 = sshll.u32 1, 1
    %s101 = ssub.s32 %s100, 1
    %102 = vst [vmem:[%s1] sm:%s101] %v99

// kernel: _elastic_conv_forward.1
$region0: #{_elastic_conv_forward.1}
  #allocation0 [shape = 'u32[]', space=smem, size = 0x4, offset = 0x4, fixed_abs, tag = 'smem constant byte address 0x4 - core index']
  #allocation1 [shape = 'u32[144,128]{1,0:T(1,128)}', space=vmem, size = 0x12000, scoped, tag = 'internal scratch']
  #allocation2 [shape = 'f32[20,128]{1,0:T(8,128)}', space=vmem, size = 0x3000, scoped, tag = 'scratch operand']
  #allocation3 [shape = 's32[1]{0}', space=sflag, size = 0x4, scoped, tag = 'scratch operand']
  #allocation4 [shape = 's32[]', space=sflag, size = 0x4, offset = 0, fixed_abs, tag = 'sflag constant byte address 0x0 - dummy sync flag']
  %s0 = inlined_call_operand.vmem [shape: f32[2,20,128], index: 0, kind: input, shape index: {}]
  %s1 = inlined_call_operand.vmem [shape: f32[5,128,128], index: 1, kind: input, shape index: {}]
  %s2 = inlined_call_operand.vmem [shape: f32[1,128], index: 2, kind: input, shape index: {}]
  %s3 = inlined_call_operand.vmem [shape: f32[2,16,128], index: 3, kind: output, shape index: {}]
  %s4 = sld [smem:[#allocation0]]
  $region78: #{_elastic_conv_forward.1} parent=0
    _
  %s6 = ssub.s32 1, %s4
  %s7 = scalar_select 0, %s6, %s4
  loop: start=0, step=1, limit=4
  $region2: #{_elastic_conv_forward.1} parent=0 // loop_pre_header
    _
  $region3: #{_elastic_conv_forward.1} parent=0 // loop_header
    %s9 = sphi 0, %s13
    %p10 = scmp.ge.s32.totalorder %s9, 4
    %s16 = sphi 0, %s28
    %s17 = sphi 0, %s24
    %s18 = sphi 0, %s16
    %s19 = sphi 0, %s17
    %s20 = sphi 0, %s18
    %s21 = sphi 0, %s19
    %s29 = sphi 0, %s29
    %s31 = sphi 0, %s29
    %s32 = sphi 0, %s31
    %s46 = sphi 0, %s32
    %s50 = sphi 0, %s50
    %s52 = sphi 0, %s50
    %s53 = sphi 0, %s52
    %s67 = sphi 0, %s53
    %s75 = sphi 0, %s77
    %s78 = sphi 0, %s75
    %s79 = sphi 0, %s78
    %s95 = sphi 0, %s79
  $region4: #{_elastic_conv_forward.1} parent=0 // loop_header_branch
    %12 = sbr.rel (%p10) target = $region8
  $region5: #{_elastic_conv_forward.1} parent=0 // loop_body
    %s14 = ssub.s32 %s9, 1
    %s15 = ssub.s32 %s9, 2
    %s22 = sadd.s32 1, %s17
    %p23 = scmp.ge.s32.totalorder %s22, 1
    %s24 = scalar_select %p23, 0, %s22
    %s25 = sadd.s32 1, %s16
    %s26 = scalar_select %p23, %s25, %s16
    %p27 = scmp.ge.s32.totalorder %s26, 2
    %s28 = scalar_select %p27, 0, %s26
    %s30 = sadd.s32 %s29, 1
    %p33 = scmp.eq.s32.totalorder %s9, 1
    %p34 = scmp.ne.s32.totalorder %s29, %s31
    %p35 = scmp.eq.s32.totalorder %s9, 0
    %p36 = por %p34, %p35
    %p37 = scmp.ne.s32.totalorder %s29, %s31
    %p38 = scmp.eq.s32.totalorder %s14, 1
    %p39 = por %p37, %p38
    %p40 = scmp.ne.s32.totalorder %s31, %s32
    %p41 = scmp.eq.s32.totalorder %s14, 0
    %p42 = por %p40, %p41
    %p43 = scmp.ne.s32.totalorder %s31, %s32
    %p44 = scmp.eq.s32.totalorder %s15, 1
    %p45 = por %p43, %p44
    %p47 = scmp.ne.s32.totalorder %s32, %s46
    %p48 = scmp.eq.s32.totalorder %s15, 0
    %p49 = por %p47, %p48
    %s51 = sadd.s32 %s50, 1
    %p54 = scmp.eq.s32.totalorder %s9, 1
    %p55 = scmp.ne.s32.totalorder %s50, %s52
    %p56 = scmp.eq.s32.totalorder %s9, 0
    %p57 = por %p55, %p56
    %p58 = scmp.ne.s32.totalorder %s50, %s52
    %p59 = scmp.eq.s32.totalorder %s14, 1
    %p60 = por %p58, %p59
    %p61 = scmp.ne.s32.totalorder %s52, %s53
    %p62 = scmp.eq.s32.totalorder %s14, 0
    %p63 = por %p61, %p62
    %p64 = scmp.ne.s32.totalorder %s52, %s53
    %p65 = scmp.eq.s32.totalorder %s15, 1
    %p66 = por %p64, %p65
    %p68 = scmp.ne.s32.totalorder %s53, %s67
    %p69 = scmp.eq.s32.totalorder %s15, 0
    %p70 = por %p68, %p69
    %s71 = ssub.s32 %s16, %s28
    %s72 = ssub.s32 %s17, %s24
    %s73 = sor.u32 %s71, %s72
    %p74 = scmp.eq.s32.totalorder %s73, 0
    %s76 = sadd.s32 %s75, 1
    %s77 = scalar_select %p74, %s75, %s76
    %p80 = pneg %p74
    %p81 = scmp.eq.s32.totalorder %s9, 1
    %p82 = por %p80, %p81
    %p83 = scmp.ne.s32.totalorder %s75, %s78
    %p84 = scmp.eq.s32.totalorder %s9, 0
    %p85 = por %p83, %p84
    %p86 = scmp.ne.s32.totalorder %s75, %s78
    %p87 = scmp.eq.s32.totalorder %s14, 1
    %p88 = por %p86, %p87
    %p89 = scmp.ne.s32.totalorder %s78, %s79
    %p90 = scmp.eq.s32.totalorder %s14, 0
    %p91 = por %p89, %p90
    %p92 = scmp.ne.s32.totalorder %s78, %s79
    %p93 = scmp.eq.s32.totalorder %s15, 1
    %p94 = por %p92, %p93
    %p96 = scmp.ne.s32.totalorder %s79, %s95
    %p97 = scmp.eq.s32.totalorder %s15, 0
    %p98 = por %p96, %p97
    %p99 = scmp.le.s32.totalorder 1, %s9
    %p100 = scmp.lt.s32.totalorder %s9, 3
    %p101 = pnand %p99, %p100
    %p102 = pneg %p101
    // Predicated region
    $region9: #{_elastic_conv_forward.1} parent=5 // pred_check
      _
    $region10: #{_elastic_conv_forward.1} parent=5 // pred_check_branch
      %104 = sbr.rel (%p101) target = $region12
    $region11: #{_elastic_conv_forward.1} parent=5 // pred_region
      %s105 = ssub.s32 %s9, 1
      // Predicated region
      $region13: #{_elastic_conv_forward.1} parent=11 // pred_check
        %p106 = pneg %p42
      $region14: #{_elastic_conv_forward.1} parent=11 // pred_check_branch
        %108 = sbr.rel (%p106) target = $region16
      $region15: #{_elastic_conv_forward.1} parent=11 // pred_region
        _
      $region16: #{_elastic_conv_forward.1} parent=11 // pred_fallthru
        _
      // Predicated region
      $region17: #{_elastic_conv_forward.1} parent=11 // pred_check
        %p109 = pneg %p63
      $region18: #{_elastic_conv_forward.1} parent=11 // pred_check_branch
        %111 = sbr.rel (%p109) target = $region20
      $region19: #{_elastic_conv_forward.1} parent=11 // pred_region
        _
      $region20: #{_elastic_conv_forward.1} parent=11 // pred_fallthru
        _
    $region12: #{_elastic_conv_forward.1} parent=5 // pred_fallthru
      _
    %p112 = scmp.lt.s32.totalorder %s9, 2
    // Predicated region
    $region21: #{_elastic_conv_forward.1} parent=5 // pred_check
      %p113 = pneg %p112
    $region22: #{_elastic_conv_forward.1} parent=5 // pred_check_branch
      %115 = sbr.rel (%p113) target = $region24
    $region23: #{_elastic_conv_forward.1} parent=5 // pred_region
      _
    $region24: #{_elastic_conv_forward.1} parent=5 // pred_fallthru
      _
    %p116 = scmp.le.s32.totalorder 1, %s9
    %p117 = scmp.lt.s32.totalorder %s9, 3
    %p118 = pnand %p116, %p117
    %p119 = pneg %p118
    // Predicated region
    $region25: #{_elastic_conv_forward.1} parent=5 // pred_check
      _
    $region26: #{_elastic_conv_forward.1} parent=5 // pred_check_branch
      %121 = sbr.rel (%p118) target = $region28
    $region27: #{_elastic_conv_forward.1} parent=5 // pred_region
      %s122 = ssub.s32 %s9, 1
      %p123 = pneg %p42
      %p124 = pneg %p39
      %p125 = pneg %p63
      %p126 = pneg %p60
      %p127 = pneg %p91
      %p128 = pneg %p88
      %s129 = smul.u32 2, %s19
      %p130 = scmp.lt.s32.totalorder %s18, 1
      %s131 = scalar_select %p130, %s18, 1
      %p132 = scmp.lt.s32.totalorder %s129, 1
      %s133 = scalar_select %p132, %s129, 1
      %s134 = smul.addr %s131, 2
      %s135 = sadd.s32 %s133, %s134
      %s136 = smul.addr %s135, 8
      %s137 = scalar_lea.vmem %s3, %s136
      %s138 = smul.u32 2, %s19
      %p139 = scmp.lt.s32.totalorder %s18, 1
      %s140 = scalar_select %p139, %s18, 1
      %p141 = scmp.lt.s32.totalorder %s138, 1
      %s142 = scalar_select %p141, %s138, 1
      %s143 = smul.addr %s140, 2
      %s144 = sadd.s32 %s142, %s143
      %s145 = smul.addr %s144, 8
      %s146 = scalar_lea.vmem %s3, %s145
      %s147 = smul.u32 2, %s19
      %s148 = smul.u32 %s19, 16
      %s149 = smul.u32 %s18, 24
      %s150 = sadd.s32 %s148, %s149
      %s151 = scalar_lea.vmem %s0, %s150
      %p153 = scmp.lt.u32.totalorder 20, 8
      %p154 = pneg %p153
      // Predicated region
      $region29: #{_elastic_conv_forward.1} parent=27 // pred_check
        _
      $region30: #{_elastic_conv_forward.1} parent=27 // pred_check_branch
        %156 = sbr.rel (%p153) target = $region32
      $region31: #{_elastic_conv_forward.1} parent=27 // pred_region
        %s172 = sand.u32 20, 7
        %p173 = scmp.eq.s32.totalorder %s172, 0
        %p174 = pneg %p173
        // Predicated region
        $region44: #{_elastic_conv_forward.1} parent=31 // pred_check
          _
        $region45: #{_elastic_conv_forward.1} parent=31 // pred_check_branch
          %176 = sbr.rel (%p173) target = $region47
        $region46: #{_elastic_conv_forward.1} parent=31 // pred_region
          %s177 = sand.u32 20, 7
          %s178 = ssub.s32 20, %s177
          %s179 = scalar_lea.vmem %s151, %s178
          %s180 = ssub.s32 20, %s177
          %s181 = scalar_lea.vmem [#allocation2], %s180
          loop: start=0, step=1, limit=1
          $region48: #{_elastic_conv_forward.1} parent=46 // loop_pre_header
            _
          $region49: #{_elastic_conv_forward.1} parent=46 // loop_header
            %s183 = sphi 0, %s187
            %p184 = scmp.ge.s32.totalorder %s183, 1
            %s188 = sphi %s151, %s151
            %s189 = sphi [#allocation2], [#allocation2]
          $region50: #{_elastic_conv_forward.1} parent=46 // loop_header_branch
            %186 = sbr.rel (%p184) target = $region54
          $region51: #{_elastic_conv_forward.1} parent=46 // loop_body
            %v190 = vld [vmem:[%s188] sm:$0xff]
            %191 = vst [vmem:[%s189] sm:$0xff] %v190
            %v192 = vld [vmem:[%s188 + $0x8] sm:$0xff]
            %193 = vst [vmem:[%s189 + $0x8] sm:$0xff] %v192
          $region52: #{_elastic_conv_forward.1} parent=46 // loop_footer
            %s187 = sadd.s32 1, %s183
          $region53: #{_elastic_conv_forward.1} parent=46 // loop_footer_branch
            %182 = sbr.rel target = $region49
          $region54: #{_elastic_conv_forward.1} parent=46 // loop_exit
            _
          %s194 = sshll.u32 1, %s177
          %s195 = ssub.s32 %s194, 1
          loop: start=0, step=1, limit=1
          $region55: #{_elastic_conv_forward.1} parent=46 // loop_pre_header
            _
          $region56: #{_elastic_conv_forward.1} parent=46 // loop_header
            %s197 = sphi 0, %s201
            %p198 = scmp.ge.s32.totalorder %s197, 1
            %s202 = sphi %s179, %s179
            %s203 = sphi %s181, %s181
          $region57: #{_elastic_conv_forward.1} parent=46 // loop_header_branch
            %200 = sbr.rel (%p198) target = $region61
          $region58: #{_elastic_conv_forward.1} parent=46 // loop_body
            %v204 = vld [vmem:[%s202] sm:%s195]
            %205 = vst [vmem:[%s203] sm:%s195] %v204
          $region59: #{_elastic_conv_forward.1} parent=46 // loop_footer
            %s201 = sadd.s32 1, %s197
          $region60: #{_elastic_conv_forward.1} parent=46 // loop_footer_branch
            %196 = sbr.rel target = $region56
          $region61: #{_elastic_conv_forward.1} parent=46 // loop_exit
            _
        $region47: #{_elastic_conv_forward.1} parent=31 // pred_fallthru
          _
      $region32: #{_elastic_conv_forward.1} parent=27 // pred_fallthru
        _
      // Predicated region
      $region33: #{_elastic_conv_forward.1} parent=27 // pred_check
        %p157 = pneg %p153
      $region34: #{_elastic_conv_forward.1} parent=27 // pred_check_branch
        %159 = sbr.rel (%p157) target = $region36
      $region35: #{_elastic_conv_forward.1} parent=27 // pred_region
        %s160 = sshll.u32 1, 20
        %s161 = ssub.s32 %s160, 1
        loop: start=0, step=1, limit=1
        $region37: #{_elastic_conv_forward.1} parent=35 // loop_pre_header
          _
        $region38: #{_elastic_conv_forward.1} parent=35 // loop_header
          %s163 = sphi 0, %s167
          %p164 = scmp.ge.s32.totalorder %s163, 1
          %s168 = sphi %s151, %s151
          %s169 = sphi [#allocation2], [#allocation2]
        $region39: #{_elastic_conv_forward.1} parent=35 // loop_header_branch
          %166 = sbr.rel (%p164) target = $region43
        $region40: #{_elastic_conv_forward.1} parent=35 // loop_body
          %v170 = vld [vmem:[%s168] sm:%s161]
          %171 = vst [vmem:[%s169] sm:%s161] %v170
        $region41: #{_elastic_conv_forward.1} parent=35 // loop_footer
          %s167 = sadd.s32 1, %s163
        $region42: #{_elastic_conv_forward.1} parent=35 // loop_footer_branch
          %162 = sbr.rel target = $region38
        $region43: #{_elastic_conv_forward.1} parent=35 // loop_exit
          _
      $region36: #{_elastic_conv_forward.1} parent=27 // pred_fallthru
        _
      // Predicated region
      $region62: #{_elastic_conv_forward.1} parent=27 // pred_check
        _
      $region63: #{_elastic_conv_forward.1} parent=27 // pred_check_branch
        %208 = sbr.rel (0) target = $region65
      $region64: #{_elastic_conv_forward.1} parent=27 // pred_region
        %209 = vsyncadd [#allocation3], 320
      $region65: #{_elastic_conv_forward.1} parent=27 // pred_fallthru
        _
      %s210 = smul.u32 20, 1
      %s211 = sshll.u32 %s210, 4
      %212 = dma.done [#allocation3], %s211
      %v213 = vld [vmem:[#allocation2] sm:$0xff]
      %v214 = vld [vmem:[#allocation2 + $0x8] sm:$0xff]
      %v215 = vld [vmem:[%s1] sm:$0xff]
      %v216 = vld [vmem:[%s1 + $0x8] sm:$0xff]
      %v217 = vld [vmem:[%s1 + $0x10] sm:$0xff]
      %v218 = vld [vmem:[%s1 + $0x18] sm:$0xff]
      %v219 = vld [vmem:[%s1 + $0x20] sm:$0xff]
      %v220 = vld [vmem:[%s1 + $0x28] sm:$0xff]
      %v221 = vld [vmem:[%s1 + $0x30] sm:$0xff]
      %v222 = vld [vmem:[%s1 + $0x38] sm:$0xff]
      %v223 = vld [vmem:[%s1 + $0x40] sm:$0xff]
      %v224 = vld [vmem:[%s1 + $0x48] sm:$0xff]
      %v225 = vld [vmem:[%s1 + $0x50] sm:$0xff]
      %v226 = vld [vmem:[%s1 + $0x58] sm:$0xff]
      %v227 = vld [vmem:[%s1 + $0x60] sm:$0xff]
      %v228 = vld [vmem:[%s1 + $0x68] sm:$0xff]
      %v229 = vld [vmem:[%s1 + $0x70] sm:$0xff]
      %v230 = vld [vmem:[%s1 + $0x78] sm:$0xff]
      %v231 = vld [vmem:[#allocation2 + $0x1] sm:$0xff]
      %v232 = vld [vmem:[#allocation2 + $0x9] sm:$0xff]
      %s233 = scalar_lea.vmem %s1, 128
      %v234 = vld [vmem:[%s233] sm:$0xff]
      %v235 = vld [vmem:[%s233 + $0x8] sm:$0xff]
      %v236 = vld [vmem:[%s233 + $0x10] sm:$0xff]
      %v237 = vld [vmem:[%s233 + $0x18] sm:$0xff]
      %v238 = vld [vmem:[%s233 + $0x20] sm:$0xff]
      %v239 = vld [vmem:[%s233 + $0x28] sm:$0xff]
      %v240 = vld [vmem:[%s233 + $0x30] sm:$0xff]
      %v241 = vld [vmem:[%s233 + $0x38] sm:$0xff]
      %v242 = vld [vmem:[%s233 + $0x40] sm:$0xff]
      %v243 = vld [vmem:[%s233 + $0x48] sm:$0xff]
      %v244 = vld [vmem:[%s233 + $0x50] sm:$0xff]
      %v245 = vld [vmem:[%s233 + $0x58] sm:$0xff]
      %v246 = vld [vmem:[%s233 + $0x60] sm:$0xff]
      %v247 = vld [vmem:[%s233 + $0x68] sm:$0xff]
      %v248 = vld [vmem:[%s233 + $0x70] sm:$0xff]
      %v249 = vld [vmem:[%s233 + $0x78] sm:$0xff]
      %250 = vmatprep.subr.mxu0 0.0
      %251 = vmatpush1.msra.mxu0 %v249
      %252 = vmatprep.subr.mxu0 0.0
      %253 = vmatpush1.msra.mxu0 %v248
      %254 = vmatprep.subr.mxu0 0.0
      %255 = vmatpush1.msra.mxu0 %v247
      %256 = vmatprep.subr.mxu0 0.0
      %257 = vmatpush1.msra.mxu0 %v246
      %258 = vmatprep.subr.mxu0 0.0
      %259 = vmatpush1.msra.mxu0 %v245
      %260 = vmatprep.subr.mxu0 0.0
      %261 = vmatpush1.msra.mxu0 %v244
      %262 = vmatprep.subr.mxu0 0.0
      %263 = vmatpush1.msra.mxu0 %v243
      %264 = vmatprep.subr.mxu0 0.0
      %265 = vmatpush1.msra.mxu0 %v242
      %266 = vmatprep.subr.mxu0 0.0
      %267 = vmatpush1.msra.mxu0 %v241
      %268 = vmatprep.subr.mxu0 0.0
      %269 = vmatpush1.msra.mxu0 %v240
      %270 = vmatprep.subr.mxu0 0.0
      %271 = vmatpush1.msra.mxu0 %v239
      %272 = vmatprep.subr.mxu0 0.0
      %273 = vmatpush1.msra.mxu0 %v238
      %274 = vmatprep.subr.mxu0 0.0
      %275 = vmatpush1.msra.mxu0 %v237
      %276 = vmatprep.subr.mxu0 0.0
      %277 = vmatpush1.msra.mxu0 %v236
      %278 = vmatprep.subr.mxu0 0.0
      %279 = vmatpush1.msra.mxu0 %v235
      %280 = vmatprep.subr.mxu0 0.0
      %281 = vmatpush1.msra.mxu0 %v234
      %282 = vmatprep.subr.mxu0 0.0
      %283 = vmatpush2.msra.mxu0 0.0
      %284 = vmatprep.subr.mxu0 0.0
      %285 = vmatpush2.msra.mxu0 0.0
      %286 = vmatprep.subr.mxu0 0.0
      %287 = vmatpush2.msra.mxu0 0.0
      %288 = vmatprep.subr.mxu0 0.0
      %289 = vmatpush2.msra.mxu0 0.0
      %290 = vmatprep.subr.mxu0 0.0
      %291 = vmatpush2.msra.mxu0 0.0
      %292 = vmatprep.subr.mxu0 0.0
      %293 = vmatpush2.msra.mxu0 0.0
      %294 = vmatprep.subr.mxu0 0.0
      %295 = vmatpush2.msra.mxu0 0.0
      %296 = vmatprep.subr.mxu0 0.0
      %297 = vmatpush2.msra.mxu0 0.0
      %298 = vmatprep.subr.mxu0 0.0
      %299 = vmatpush2.msra.mxu0 0.0
      %300 = vmatprep.subr.mxu0 0.0
      %301 = vmatpush2.msra.mxu0 0.0
      %302 = vmatprep.subr.mxu0 0.0
      %303 = vmatpush2.msra.mxu0 0.0
      %304 = vmatprep.subr.mxu0 0.0
      %305 = vmatpush2.msra.mxu0 0.0
      %306 = vmatprep.subr.mxu0 0.0
      %307 = vmatpush2.msra.mxu0 0.0
      %308 = vmatprep.subr.mxu0 0.0
      %309 = vmatpush2.msra.mxu0 0.0
      %310 = vmatprep.subr.mxu0 0.0
      %311 = vmatpush2.msra.mxu0 0.0
      %312 = vmatprep.subr.mxu0 0.0
      %313 = vmatpush2.msra.mxu0 0.0
      %314 = vmatprep.mubr.f32.mxu0 0.0
      %315 = vmatmul.mubr.f32.gmra.mxu0 %v231
      %v316 = vpop.f32.mrf.mxu0
      %v317 = vadd.f32 0.0, %v316
      %v318 = vpop.f32.mrf.mxu0
      %319 = vmatprep.mubr.f32.mxu0 0.0
      %320 = vmatmul.mubr.f32.gmra.mxu0 %v232
      %v321 = vpop.f32.mrf.mxu0
      %v322 = vadd.f32 0.0, %v321
      %v323 = vpop.f32.mrf.mxu0
      %324 = vdwg.mxu0
      %325 = vmatprep.subr.mxu0 0.0
      %326 = vmatpush1.msra.mxu0 %v230
      %327 = vmatprep.subr.mxu0 0.0
      %328 = vmatpush1.msra.mxu0 %v229
      %329 = vmatprep.subr.mxu0 0.0
      %330 = vmatpush1.msra.mxu0 %v228
      %331 = vmatprep.subr.mxu0 0.0
      %332 = vmatpush1.msra.mxu0 %v227
      %333 = vmatprep.subr.mxu0 0.0
      %334 = vmatpush1.msra.mxu0 %v226
      %335 = vmatprep.subr.mxu0 0.0
      %336 = vmatpush1.msra.mxu0 %v225
      %337 = vmatprep.subr.mxu0 0.0
      %338 = vmatpush1.msra.mxu0 %v224
      %339 = vmatprep.subr.mxu0 0.0
      %340 = vmatpush1.msra.mxu0 %v223
      %341 = vmatprep.subr.mxu0 0.0
      %342 = vmatpush1.msra.mxu0 %v222
      %343 = vmatprep.subr.mxu0 0.0
      %344 = vmatpush1.msra.mxu0 %v221
      %345 = vmatprep.subr.mxu0 0.0
      %346 = vmatpush1.msra.mxu0 %v220
      %347 = vmatprep.subr.mxu0 0.0
      %348 = vmatpush1.msra.mxu0 %v219
      %349 = vmatprep.subr.mxu0 0.0
      %350 = vmatpush1.msra.mxu0 %v218
      %351 = vmatprep.subr.mxu0 0.0
      %352 = vmatpush1.msra.mxu0 %v217
      %353 = vmatprep.subr.mxu0 0.0
      %354 = vmatpush1.msra.mxu0 %v216
      %355 = vmatprep.subr.mxu0 0.0
      %356 = vmatpush1.msra.mxu0 %v215
      %357 = vmatprep.subr.mxu0 0.0
      %358 = vmatpush2.msra.mxu0 0.0
      %359 = vmatprep.subr.mxu0 0.0
      %360 = vmatpush2.msra.mxu0 0.0
      %361 = vmatprep.subr.mxu0 0.0
      %362 = vmatpush2.msra.mxu0 0.0
      %363 = vmatprep.subr.mxu0 0.0
      %364 = vmatpush2.msra.mxu0 0.0
      %365 = vmatprep.subr.mxu0 0.0
      %366 = vmatpush2.msra.mxu0 0.0
      %367 = vmatprep.subr.mxu0 0.0
      %368 = vmatpush2.msra.mxu0 0.0
      %369 = vmatprep.subr.mxu0 0.0
      %370 = vmatpush2.msra.mxu0 0.0
      %371 = vmatprep.subr.mxu0 0.0
      %372 = vmatpush2.msra.mxu0 0.0
      %373 = vmatprep.subr.mxu0 0.0
      %374 = vmatpush2.msra.mxu0 0.0
      %375 = vmatprep.subr.mxu0 0.0
      %376 = vmatpush2.msra.mxu0 0.0
      %377 = vmatprep.subr.mxu0 0.0
      %378 = vmatpush2.msra.mxu0 0.0
      %379 = vmatprep.subr.mxu0 0.0
      %380 = vmatpush2.msra.mxu0 0.0
      %381 = vmatprep.subr.mxu0 0.0
      %382 = vmatpush2.msra.mxu0 0.0
      %383 = vmatprep.subr.mxu0 0.0
      %384 = vmatpush2.msra.mxu0 0.0
      %385 = vmatprep.subr.mxu0 0.0
      %386 = vmatpush2.msra.mxu0 0.0
      %387 = vmatprep.subr.mxu0 0.0
      %388 = vmatpush2.msra.mxu0 0.0
      %389 = vmatprep.mubr.f32.mxu0 0.0
      %390 = vmatmul.mubr.f32.gmra.mxu0 %v213
      %v391 = vpop.f32.mrf.mxu0
      %v392 = vadd.f32 %v317, %v391
      %v393 = vpop.f32.mrf.mxu0
      %394 = vmatprep.mubr.f32.mxu0 0.0
      %395 = vmatmul.mubr.f32.gmra.mxu0 %v214
      %v396 = vpop.f32.mrf.mxu0
      %v397 = vadd.f32 %v322, %v396
      %v398 = vpop.f32.mrf.mxu0
      %399 = vdwg.mxu0
      %v400 = vld [vmem:[#allocation2 + $0x2] sm:$0xff]
      %v401 = vld [vmem:[#allocation2 + $0xa] sm:$0xff]
      %s402 = scalar_lea.vmem %s1, 256
      %v403 = vld [vmem:[%s402] sm:$0xff]
      %v404 = vld [vmem:[%s402 + $0x8] sm:$0xff]
      %v405 = vld [vmem:[%s402 + $0x10] sm:$0xff]
      %v406 = vld [vmem:[%s402 + $0x18] sm:$0xff]
      %v407 = vld [vmem:[%s402 + $0x20] sm:$0xff]
      %v408 = vld [vmem:[%s402 + $0x28] sm:$0xff]
      %v409 = vld [vmem:[%s402 + $0x30] sm:$0xff]
      %v410 = vld [vmem:[%s402 + $0x38] sm:$0xff]
      %v411 = vld [vmem:[%s402 + $0x40] sm:$0xff]
      %v412 = vld [vmem:[%s402 + $0x48] sm:$0xff]
      %v413 = vld [vmem:[%s402 + $0x50] sm:$0xff]
      %v414 = vld [vmem:[%s402 + $0x58] sm:$0xff]
      %v415 = vld [vmem:[%s402 + $0x60] sm:$0xff]
      %v416 = vld [vmem:[%s402 + $0x68] sm:$0xff]
      %v417 = vld [vmem:[%s402 + $0x70] sm:$0xff]
      %v418 = vld [vmem:[%s402 + $0x78] sm:$0xff]
      %419 = vmatprep.subr.mxu0 0.0
      %420 = vmatpush1.msra.mxu0 %v418
      %421 = vmatprep.subr.mxu0 0.0
      %422 = vmatpush1.msra.mxu0 %v417
      %423 = vmatprep.subr.mxu0 0.0
      %424 = vmatpush1.msra.mxu0 %v416
      %425 = vmatprep.subr.mxu0 0.0
      %426 = vmatpush1.msra.mxu0 %v415
      %427 = vmatprep.subr.mxu0 0.0
      %428 = vmatpush1.msra.mxu0 %v414
      %429 = vmatprep.subr.mxu0 0.0
      %430 = vmatpush1.msra.mxu0 %v413
      %431 = vmatprep.subr.mxu0 0.0
      %432 = vmatpush1.msra.mxu0 %v412
      %433 = vmatprep.subr.mxu0 0.0
      %434 = vmatpush1.msra.mxu0 %v411
      %435 = vmatprep.subr.mxu0 0.0
      %436 = vmatpush1.msra.mxu0 %v410
      %437 = vmatprep.subr.mxu0 0.0
      %438 = vmatpush1.msra.mxu0 %v409
      %439 = vmatprep.subr.mxu0 0.0
      %440 = vmatpush1.msra.mxu0 %v408
      %441 = vmatprep.subr.mxu0 0.0
      %442 = vmatpush1.msra.mxu0 %v407
      %443 = vmatprep.subr.mxu0 0.0
      %444 = vmatpush1.msra.mxu0 %v406
      %445 = vmatprep.subr.mxu0 0.0
      %446 = vmatpush1.msra.mxu0 %v405
      %447 = vmatprep.subr.mxu0 0.0
      %448 = vmatpush1.msra.mxu0 %v404
      %449 = vmatprep.subr.mxu0 0.0
      %450 = vmatpush1.msra.mxu0 %v403
      %451 = vmatprep.subr.mxu0 0.0
      %452 = vmatpush2.msra.mxu0 0.0
      %453 = vmatprep.subr.mxu0 0.0
      %454 = vmatpush2.msra.mxu0 0.0
      %455 = vmatprep.subr.mxu0 0.0
      %456 = vmatpush2.msra.mxu0 0.0
      %457 = vmatprep.subr.mxu0 0.0
      %458 = vmatpush2.msra.mxu0 0.0
      %459 = vmatprep.subr.mxu0 0.0
      %460 = vmatpush2.msra.mxu0 0.0
      %461 = vmatprep.subr.mxu0 0.0
      %462 = vmatpush2.msra.mxu0 0.0
      %463 = vmatprep.subr.mxu0 0.0
      %464 = vmatpush2.msra.mxu0 0.0
      %465 = vmatprep.subr.mxu0 0.0
      %466 = vmatpush2.msra.mxu0 0.0
      %467 = vmatprep.subr.mxu0 0.0
      %468 = vmatpush2.msra.mxu0 0.0
      %469 = vmatprep.subr.mxu0 0.0
      %470 = vmatpush2.msra.mxu0 0.0
      %471 = vmatprep.subr.mxu0 0.0
      %472 = vmatpush2.msra.mxu0 0.0
      %473 = vmatprep.subr.mxu0 0.0
      %474 = vmatpush2.msra.mxu0 0.0
      %475 = vmatprep.subr.mxu0 0.0
      %476 = vmatpush2.msra.mxu0 0.0
      %477 = vmatprep.subr.mxu0 0.0
      %478 = vmatpush2.msra.mxu0 0.0
      %479 = vmatprep.subr.mxu0 0.0
      %480 = vmatpush2.msra.mxu0 0.0
      %481 = vmatprep.subr.mxu0 0.0
      %482 = vmatpush2.msra.mxu0 0.0
      %483 = vmatprep.mubr.f32.mxu0 0.0
      %484 = vmatmul.mubr.f32.gmra.mxu0 %v400
      %v485 = vpop.f32.mrf.mxu0
      %v486 = vadd.f32 0.0, %v485
      %v487 = vpop.f32.mrf.mxu0
      %488 = vmatprep.mubr.f32.mxu0 0.0
      %489 = vmatmul.mubr.f32.gmra.mxu0 %v401
      %v490 = vpop.f32.mrf.mxu0
      %v491 = vadd.f32 0.0, %v490
      %v492 = vpop.f32.mrf.mxu0
      %493 = vdwg.mxu0
      %v494 = vadd.f32 %v392, %v486
      %v495 = vadd.f32 %v397, %v491
      %v496 = vld [vmem:[#allocation2 + $0x3] sm:$0xff]
      %v497 = vld [vmem:[#allocation2 + $0xb] sm:$0xff]
      %s498 = scalar_lea.vmem %s1, 384
      %v499 = vld [vmem:[%s498] sm:$0xff]
      %v500 = vld [vmem:[%s498 + $0x8] sm:$0xff]
      %v501 = vld [vmem:[%s498 + $0x10] sm:$0xff]
      %v502 = vld [vmem:[%s498 + $0x18] sm:$0xff]
      %v503 = vld [vmem:[%s498 + $0x20] sm:$0xff]
      %v504 = vld [vmem:[%s498 + $0x28] sm:$0xff]
      %v505 = vld [vmem:[%s498 + $0x30] sm:$0xff]
      %v506 = vld [vmem:[%s498 + $0x38] sm:$0xff]
      %v507 = vld [vmem:[%s498 + $0x40] sm:$0xff]
      %v508 = vld [vmem:[%s498 + $0x48] sm:$0xff]
      %v509 = vld [vmem:[%s498 + $0x50] sm:$0xff]
      %v510 = vld [vmem:[%s498 + $0x58] sm:$0xff]
      %v511 = vld [vmem:[%s498 + $0x60] sm:$0xff]
      %v512 = vld [vmem:[%s498 + $0x68] sm:$0xff]
      %v513 = vld [vmem:[%s498 + $0x70] sm:$0xff]
      %v514 = vld [vmem:[%s498 + $0x78] sm:$0xff]
      %515 = vmatprep.subr.mxu0 0.0
      %516 = vmatpush1.msra.mxu0 %v514
      %517 = vmatprep.subr.mxu0 0.0
      %518 = vmatpush1.msra.mxu0 %v513
      %519 = vmatprep.subr.mxu0 0.0
      %520 = vmatpush1.msra.mxu0 %v512
      %521 = vmatprep.subr.mxu0 0.0
      %522 = vmatpush1.msra.mxu0 %v511
      %523 = vmatprep.subr.mxu0 0.0
      %524 = vmatpush1.msra.mxu0 %v510
      %525 = vmatprep.subr.mxu0 0.0
      %526 = vmatpush1.msra.mxu0 %v509
      %527 = vmatprep.subr.mxu0 0.0
      %528 = vmatpush1.msra.mxu0 %v508
      %529 = vmatprep.subr.mxu0 0.0
      %530 = vmatpush1.msra.mxu0 %v507
      %531 = vmatprep.subr.mxu0 0.0
      %532 = vmatpush1.msra.mxu0 %v506
      %533 = vmatprep.subr.mxu0 0.0
      %534 = vmatpush1.msra.mxu0 %v505
      %535 = vmatprep.subr.mxu0 0.0
      %536 = vmatpush1.msra.mxu0 %v504
      %537 = vmatprep.subr.mxu0 0.0
      %538 = vmatpush1.msra.mxu0 %v503
      %539 = vmatprep.subr.mxu0 0.0
      %540 = vmatpush1.msra.mxu0 %v502
      %541 = vmatprep.subr.mxu0 0.0
      %542 = vmatpush1.msra.mxu0 %v501
      %543 = vmatprep.subr.mxu0 0.0
      %544 = vmatpush1.msra.mxu0 %v500
      %545 = vmatprep.subr.mxu0 0.0
      %546 = vmatpush1.msra.mxu0 %v499
      %547 = vmatprep.subr.mxu0 0.0
      %548 = vmatpush2.msra.mxu0 0.0
      %549 = vmatprep.subr.mxu0 0.0
      %550 = vmatpush2.msra.mxu0 0.0
      %551 = vmatprep.subr.mxu0 0.0
      %552 = vmatpush2.msra.mxu0 0.0
      %553 = vmatprep.subr.mxu0 0.0
      %554 = vmatpush2.msra.mxu0 0.0
      %555 = vmatprep.subr.mxu0 0.0
      %556 = vmatpush2.msra.mxu0 0.0
      %557 = vmatprep.subr.mxu0 0.0
      %558 = vmatpush2.msra.mxu0 0.0
      %559 = vmatprep.subr.mxu0 0.0
      %560 = vmatpush2.msra.mxu0 0.0
      %561 = vmatprep.subr.mxu0 0.0
      %562 = vmatpush2.msra.mxu0 0.0
      %563 = vmatprep.subr.mxu0 0.0
      %564 = vmatpush2.msra.mxu0 0.0
      %565 = vmatprep.subr.mxu0 0.0
      %566 = vmatpush2.msra.mxu0 0.0
      %567 = vmatprep.subr.mxu0 0.0
      %568 = vmatpush2.msra.mxu0 0.0
      %569 = vmatprep.subr.mxu0 0.0
      %570 = vmatpush2.msra.mxu0 0.0
      %571 = vmatprep.subr.mxu0 0.0
      %572 = vmatpush2.msra.mxu0 0.0
      %573 = vmatprep.subr.mxu0 0.0
      %574 = vmatpush2.msra.mxu0 0.0
      %575 = vmatprep.subr.mxu0 0.0
      %576 = vmatpush2.msra.mxu0 0.0
      %577 = vmatprep.subr.mxu0 0.0
      %578 = vmatpush2.msra.mxu0 0.0
      %579 = vmatprep.mubr.f32.mxu0 0.0
      %580 = vmatmul.mubr.f32.gmra.mxu0 %v496
      %v581 = vpop.f32.mrf.mxu0
      %v582 = vadd.f32 0.0, %v581
      %v583 = vpop.f32.mrf.mxu0
      %584 = vmatprep.mubr.f32.mxu0 0.0
      %585 = vmatmul.mubr.f32.gmra.mxu0 %v497
      %v586 = vpop.f32.mrf.mxu0
      %v587 = vadd.f32 0.0, %v586
      %v588 = vpop.f32.mrf.mxu0
      %589 = vdwg.mxu0
      %v590 = vadd.f32 %v494, %v582
      %v591 = vadd.f32 %v495, %v587
      %v592 = vld [vmem:[#allocation2 + $0x4] sm:$0xff]
      %v593 = vld [vmem:[#allocation2 + $0xc] sm:$0xff]
      %s594 = scalar_lea.vmem %s1, 512
      %v595 = vld [vmem:[%s594] sm:$0xff]
      %v596 = vld [vmem:[%s594 + $0x8] sm:$0xff]
      %v597 = vld [vmem:[%s594 + $0x10] sm:$0xff]
      %v598 = vld [vmem:[%s594 + $0x18] sm:$0xff]
      %v599 = vld [vmem:[%s594 + $0x20] sm:$0xff]
      %v600 = vld [vmem:[%s594 + $0x28] sm:$0xff]
      %v601 = vld [vmem:[%s594 + $0x30] sm:$0xff]
      %v602 = vld [vmem:[%s594 + $0x38] sm:$0xff]
      %v603 = vld [vmem:[%s594 + $0x40] sm:$0xff]
      %v604 = vld [vmem:[%s594 + $0x48] sm:$0xff]
      %v605 = vld [vmem:[%s594 + $0x50] sm:$0xff]
      %v606 = vld [vmem:[%s594 + $0x58] sm:$0xff]
      %v607 = vld [vmem:[%s594 + $0x60] sm:$0xff]
      %v608 = vld [vmem:[%s594 + $0x68] sm:$0xff]
      %v609 = vld [vmem:[%s594 + $0x70] sm:$0xff]
      %v610 = vld [vmem:[%s594 + $0x78] sm:$0xff]
      %611 = vmatprep.subr.mxu0 0.0
      %612 = vmatpush1.msra.mxu0 %v610
      %613 = vmatprep.subr.mxu0 0.0
      %614 = vmatpush1.msra.mxu0 %v609
      %615 = vmatprep.subr.mxu0 0.0
      %616 = vmatpush1.msra.mxu0 %v608
      %617 = vmatprep.subr.mxu0 0.0
      %618 = vmatpush1.msra.mxu0 %v607
      %619 = vmatprep.subr.mxu0 0.0
      %620 = vmatpush1.msra.mxu0 %v606
      %621 = vmatprep.subr.mxu0 0.0
      %622 = vmatpush1.msra.mxu0 %v605
      %623 = vmatprep.subr.mxu0 0.0
      %624 = vmatpush1.msra.mxu0 %v604
      %625 = vmatprep.subr.mxu0 0.0
      %626 = vmatpush1.msra.mxu0 %v603
      %627 = vmatprep.subr.mxu0 0.0
      %628 = vmatpush1.msra.mxu0 %v602
      %629 = vmatprep.subr.mxu0 0.0
      %630 = vmatpush1.msra.mxu0 %v601
      %631 = vmatprep.subr.mxu0 0.0
      %632 = vmatpush1.msra.mxu0 %v600
      %633 = vmatprep.subr.mxu0 0.0
      %634 = vmatpush1.msra.mxu0 %v599
      %635 = vmatprep.subr.mxu0 0.0
      %636 = vmatpush1.msra.mxu0 %v598
      %637 = vmatprep.subr.mxu0 0.0
      %638 = vmatpush1.msra.mxu0 %v597
      %639 = vmatprep.subr.mxu0 0.0
      %640 = vmatpush1.msra.mxu0 %v596
      %641 = vmatprep.subr.mxu0 0.0
      %642 = vmatpush1.msra.mxu0 %v595
      %643 = vmatprep.subr.mxu0 0.0
      %644 = vmatpush2.msra.mxu0 0.0
      %645 = vmatprep.subr.mxu0 0.0
      %646 = vmatpush2.msra.mxu0 0.0
      %647 = vmatprep.subr.mxu0 0.0
      %648 = vmatpush2.msra.mxu0 0.0
      %649 = vmatprep.subr.mxu0 0.0
      %650 = vmatpush2.msra.mxu0 0.0
      %651 = vmatprep.subr.mxu0 0.0
      %652 = vmatpush2.msra.mxu0 0.0
      %653 = vmatprep.subr.mxu0 0.0
      %654 = vmatpush2.msra.mxu0 0.0
      %655 = vmatprep.subr.mxu0 0.0
      %656 = vmatpush2.msra.mxu0 0.0
      %657 = vmatprep.subr.mxu0 0.0
      %658 = vmatpush2.msra.mxu0 0.0
      %659 = vmatprep.subr.mxu0 0.0
      %660 = vmatpush2.msra.mxu0 0.0
      %661 = vmatprep.subr.mxu0 0.0
      %662 = vmatpush2.msra.mxu0 0.0
      %663 = vmatprep.subr.mxu0 0.0
      %664 = vmatpush2.msra.mxu0 0.0
      %665 = vmatprep.subr.mxu0 0.0
      %666 = vmatpush2.msra.mxu0 0.0
      %667 = vmatprep.subr.mxu0 0.0
      %668 = vmatpush2.msra.mxu0 0.0
      %669 = vmatprep.subr.mxu0 0.0
      %670 = vmatpush2.msra.mxu0 0.0
      %671 = vmatprep.subr.mxu0 0.0
      %672 = vmatpush2.msra.mxu0 0.0
      %673 = vmatprep.subr.mxu0 0.0
      %674 = vmatpush2.msra.mxu0 0.0
      %675 = vmatprep.mubr.f32.mxu0 0.0
      %676 = vmatmul.mubr.f32.gmra.mxu0 %v592
      %v677 = vpop.f32.mrf.mxu0
      %v678 = vadd.f32 0.0, %v677
      %v679 = vpop.f32.mrf.mxu0
      %680 = vmatprep.mubr.f32.mxu0 0.0
      %681 = vmatmul.mubr.f32.gmra.mxu0 %v593
      %v682 = vpop.f32.mrf.mxu0
      %v683 = vadd.f32 0.0, %v682
      %v684 = vpop.f32.mrf.mxu0
      %685 = vdwg.mxu0
      %v686 = vadd.f32 %v590, %v678
      %v687 = vadd.f32 %v591, %v683
      %v688 = vld [vmem:[%s2] sm:$0x1]
      %v690 = vlaneseq
      %v691 = vshrl.u32 %v690, 7
      %v692 = vsub.s32 0, %v691
      %v693 = vrot.slane %v688, %v692
      %v695 = vadd.f32 %v686, %v693
      %v696 = vadd.f32 %v687, %v693
      %697 = vst [vmem:[%s146] sm:$0xff] %v695
      %698 = vst [vmem:[%s146 + $0x8] sm:$0xff] %v696
      %s699 = smul.u32 2, %s19
      %p700 = scmp.lt.s32.totalorder %s18, 1
      %s701 = scalar_select %p700, %s18, 1
      %p702 = scmp.lt.s32.totalorder %s699, 1
      %s703 = scalar_select %p702, %s699, 1
      %s704 = smul.addr %s701, 2
      %s705 = sadd.s32 %s703, %s704
      %s706 = smul.addr %s705, 8
      %s707 = scalar_lea.vmem %s3, %s706
      // Predicated region
      $region66: #{_elastic_conv_forward.1} parent=27 // pred_check
        %p708 = pneg %p88
      $region67: #{_elastic_conv_forward.1} parent=27 // pred_check_branch
        %710 = sbr.rel (%p708) target = $region69
      $region68: #{_elastic_conv_forward.1} parent=27 // pred_region
        %s711 = smul.u32 2, %s19
      $region69: #{_elastic_conv_forward.1} parent=27 // pred_fallthru
        _
    $region28: #{_elastic_conv_forward.1} parent=5 // pred_fallthru
      _
    %p712 = scmp.le.s32.totalorder 2, %s9
    // Predicated region
    $region70: #{_elastic_conv_forward.1} parent=5 // pred_check
      %p713 = pneg %p712
    $region71: #{_elastic_conv_forward.1} parent=5 // pred_check_branch
      %715 = sbr.rel (%p713) target = $region73
    $region72: #{_elastic_conv_forward.1} parent=5 // pred_region
      %s716 = ssub.s32 %s9, 2
      // Predicated region
      $region74: #{_elastic_conv_forward.1} parent=72 // pred_check
        %p717 = pneg %p94
      $region75: #{_elastic_conv_forward.1} parent=72 // pred_check_branch
        %719 = sbr.rel (%p717) target = $region77
      $region76: #{_elastic_conv_forward.1} parent=72 // pred_region
        %s720 = smul.u32 2, %s21
        %p721 = scmp.lt.s32.totalorder %s20, 1
        %s722 = scalar_select %p721, %s20, 1
        %p723 = scmp.lt.s32.totalorder %s720, 1
        %s724 = scalar_select %p723, %s720, 1
        %s725 = smul.addr %s722, 2
        %s726 = sadd.s32 %s724, %s725
        %s727 = smul.addr %s726, 8
        %s728 = scalar_lea.vmem %s3, %s727
      $region77: #{_elastic_conv_forward.1} parent=72 // pred_fallthru
        _
    $region73: #{_elastic_conv_forward.1} parent=5 // pred_fallthru
      _
  $region6: #{_elastic_conv_forward.1} parent=0 // loop_footer
    %s13 = sadd.s32 1, %s9
  $region7: #{_elastic_conv_forward.1} parent=0 // loop_footer_branch
    %8 = sbr.rel target = $region3
  $region8: #{_elastic_conv_forward.1} parent=0 // loop_exit
    _
  %729 = vsyncmov [#allocation3]
  %s730 = vpop.sfrf %729
  %p731 = scmp.eq.s32.totalorder %s730, 0
  %p732 = pneg %p731
  %734 = shalt.err (%p732)

</llo_original>
